<compile_context>
chip_gen: v7x
topology: tpu7x:2x2x1
jax: 0.10.0
libtpu: 0.0.40
codegen_flags: <defaults>
</compile_context>

<pallas_src>
import jax
import jax.numpy as jnp
from jax.experimental import pallas as pl
from jax.experimental.pallas import tpu as pltpu

EPS = 1e-5
NEG_SLOPE = 0.2


def _leaky_relu(x):
    return jnp.where(x > 0, x, NEG_SLOPE * x)


def _make_resblock_kernel(B, L, Cin, Cout, has_res, use_bf16):
    """Build a ResBlock kernel specialized for (block shape, residual kind, dtype)."""
    mm_dtype = jnp.bfloat16 if use_bf16 else jnp.float32
    n_elems = float(L * Cout)   # GroupNorm(1) normalizes over all (C, L) per sample

    def _im2col3(v, C):
        # v: (B, L, C) f32 -> (B, L, 3C) = [v[l-1] | v[l] | v[l+1]] with zero
        # boundaries (conv pad=1).  Built entirely from vregs (no VMEM scratch).
        zrow = jnp.zeros((B, 1, C), jnp.float32)
        vp = jnp.concatenate([zrow, v, zrow], axis=1)           # (B, L+2, C)
        v_m1 = vp[:, 0:L, :]                                    # v[l-1]
        v_p1 = vp[:, 2:L + 2, :]                                # v[l+1]
        return jnp.concatenate([v_m1, v, v_p1], axis=2)         # (B, L, 3C)

    def _groupnorm1(v, g, be):
        # One-pass statistics (sum & sum-of-squares), f32, per sample.
        s = jnp.sum(jnp.sum(v, axis=2, keepdims=True), axis=1, keepdims=True)
        ss = jnp.sum(jnp.sum(v * v, axis=2, keepdims=True), axis=1, keepdims=True)
        mean = s / n_elems
        var = jnp.maximum(ss / n_elems - mean * mean, 0.0)
        rstd = jax.lax.rsqrt(var + EPS)
        return (v - mean) * rstd * g + be                       # g, be: (1, Cout)

    def kernel(*refs):
        if has_res:
            (x_ref, w1_ref, b1_ref, g1_ref, be1_ref,
             w2_ref, b2_ref, g2_ref, be2_ref,
             wr_ref, br_ref, o_ref) = refs
        else:
            (x_ref, w1_ref, b1_ref, g1_ref, be1_ref,
             w2_ref, b2_ref, g2_ref, be2_ref, o_ref) = refs

        x = x_ref[...].astype(jnp.float32)                      # (B, L, Cin)

        # ---- conv1 (k=3, stride=1, pad=1): single im2col matmul ----
        xcol = _im2col3(x, Cin).astype(mm_dtype).reshape(B * L, 3 * Cin)
        h = jnp.dot(xcol, w1_ref[...], preferred_element_type=jnp.float32)
        h = (h + b1_ref[...]).reshape(B, L, Cout)

        # ---- GroupNorm(1) + LeakyReLU(0.2) ----
        h = _leaky_relu(_groupnorm1(h, g1_ref[...], be1_ref[...]))

        # ---- conv2 (k=3, stride=1, pad=1) ----
        hcol = _im2col3(h, Cout).astype(mm_dtype).reshape(B * L, 3 * Cout)
        h2 = jnp.dot(hcol, w2_ref[...], preferred_element_type=jnp.float32)
        h2 = (h2 + b2_ref[...]).reshape(B, L, Cout)
        h2 = _groupnorm1(h2, g2_ref[...], be2_ref[...])

        # ---- residual: 1x1 conv only when Cin != Cout, else pure passthrough ----
        if has_res:
            xr = x.astype(mm_dtype).reshape(B * L, Cin)
            res = jnp.dot(xr, wr_ref[...], preferred_element_type=jnp.float32)
            res = (res + br_ref[...]).reshape(B, L, Cout)
        else:
            res = x   # Cin == Cout guaranteed by construction

        # ---- add + LeakyReLU(0.2) ----
        o_ref[...] = _leaky_relu(h2 + res).astype(o_ref.dtype)

    return kernel


def _pick_b_tile(n, cap=8):
    """Largest divisor of n (<= cap) that keeps >= 2 grid steps when possible."""
    cands = [d for d in range(1, min(n, cap) + 1) if n % d == 0]
    multi = [d for d in cands if n // d >= 2]
    return max(multi) if multi else max(cands)


def resblock_forward(x_ncl, kparams, *, has_res, use_bf16=True, b_tile=None):
    """x_ncl: (N, Cin, L) float32 (PyTorch NCL). Returns (N, Cout, L) float32."""
    N, Cin, L = x_ncl.shape
    Cout = kparams[1].shape[-1]
    if b_tile is None:
        b_tile = _pick_b_tile(N)
    assert N % b_tile == 0, (N, b_tile)

    # TODO(synk): a channels-last model layout would make these transposes free.
    x_nlc = jnp.transpose(x_ncl, (0, 2, 1))                     # (N, L, Cin)

    kernel = _make_resblock_kernel(b_tile, L, Cin, Cout, has_res, use_bf16)

    def full_spec(arr):
        zeros = (0,) * arr.ndim
        return pl.BlockSpec(arr.shape, lambda i: zeros)

    in_specs = [pl.BlockSpec((b_tile, L, Cin), lambda i: (i, 0, 0))]
    in_specs += [full_spec(p) for p in kparams]

    out_nlc = pl.pallas_call(
        kernel,
        out_shape=jax.ShapeDtypeStruct((N, L, Cout), jnp.float32),
        grid=(N // b_tile,),
        in_specs=in_specs,
        out_specs=pl.BlockSpec((b_tile, L, Cout), lambda i: (i, 0, 0)),
        compiler_params=pltpu.CompilerParams(
            dimension_semantics=("parallel",)),
    )(x_nlc, *kparams)

    return jnp.transpose(out_nlc, (0, 2, 1))                    # (N, Cout, L)


# --------------- parameter construction (deterministic, in-script) ---------------

def spectral_normalize(w, key, n_iter=10):
    """Spectral normalization of a Conv1d weight (Cout, Cin, K), eval-mode style."""
    wm = w.reshape(w.shape[0], -1)
    u = jax.random.normal(key, (w.shape[0],), jnp.float32)
    u = u / (jnp.linalg.norm(u) + 1e-12)
    for _ in range(n_iter):
        v = wm.T @ u
        v = v / (jnp.linalg.norm(v) + 1e-12)
        u = wm @ v
        u = u / (jnp.linalg.norm(u) + 1e-12)
    sigma = u @ (wm @ v)
    return w / sigma


def make_params(key, cin, cout, k=3, use_bf16=True):
    """Returns (kernel_params, torch_like_params, has_res)."""
    has_res = cin != cout          # stride fixed to 1
    keys = jax.random.split(key, 8)
    w1 = spectral_normalize(
        0.2 * jax.random.normal(keys[0], (cout, cin, k), jnp.float32), keys[4])
    b1 = 0.1 * jax.random.normal(keys[1], (cout,), jnp.float32)
    w2 = spectral_normalize(
        0.2 * jax.random.normal(keys[2], (cout, cout, k), jnp.float32), keys[5])
    b2 = 0.1 * jax.random.normal(keys[3], (cout,), jnp.float32)
    g1 = jnp.ones((cout,), jnp.float32)
    be1 = jnp.zeros((cout,), jnp.float32)
    g2 = jnp.ones((cout,), jnp.float32)
    be2 = jnp.zeros((cout,), jnp.float32)

    mm_dtype = jnp.bfloat16 if use_bf16 else jnp.float32

    def conv_to_mat(w):            # (Cout, Cin, K) -> (K*Cin, Cout), tap-major rows
        return jnp.transpose(w, (2, 1, 0)).reshape(-1, w.shape[0]).astype(mm_dtype)

    kparams = [conv_to_mat(w1), b1[None, :], g1[None, :], be1[None, :],
               conv_to_mat(w2), b2[None, :], g2[None, :], be2[None, :]]
    tparams = [w1, b1, g1, be1, w2, b2, g2, be2]
    if has_res:
        wr = 0.2 * jax.random.normal(keys[6], (cout, cin, 1), jnp.float32)
        br = 0.1 * jax.random.normal(keys[7], (cout,), jnp.float32)
        kparams += [jnp.transpose(wr[:, :, 0], (1, 0)).astype(mm_dtype), br[None, :]]
        tparams += [wr, br]
    else:
        tparams += [None, None]
    return tuple(kparams), tuple(tparams), has_res


# --------------- pure-JAX reference (mirrors the PyTorch forward) ---------------

def conv1d_ref(x, w, b, pad):
    out = jax.lax.conv_general_dilated(
        x, w, window_strides=(1,), padding=((pad, pad),),
        dimension_numbers=("NCH", "OIH", "NCH"))
    return out + b[None, :, None]


def groupnorm1_ref(x, g, b):
    mean = jnp.mean(x, axis=(1, 2), keepdims=True)
    var = jnp.mean((x - mean) ** 2, axis=(1, 2), keepdims=True)
    xn = (x - mean) * jax.lax.rsqrt(var + EPS)
    return xn * g[None, :, None] + b[None, :, None]


def resblock_ref(x, tp, has_res):
    w1, b1, g1, be1, w2, b2, g2, be2, wr, br = tp
    h = conv1d_ref(x, w1, b1, pad=1)
    h = _leaky_relu(groupnorm1_ref(h, g1, be1))
    h = conv1d_ref(h, w2, b2, pad=1)
    h = groupnorm1_ref(h, g2, be2)
    r = conv1d_ref(x, wr, br, pad=0) if has_res else x
    return _leaky_relu(h + r)


if __name__ == "__main__":
    key = jax.random.PRNGKey(0)
    k1, k2, k3, k4 = jax.random.split(key, 4)

    # Case A: Cin != Cout -> 1x1 residual conv path, bf16 MXU operands.
    N, CIN, COUT, L = 4, 4, 8, 16
    x = jax.random.normal(k1, (N, CIN, L), jnp.float32)
    kp, tp, has_res = make_params(k2, CIN, COUT, use_bf16=True)
    out = jax.block_until_ready(
        resblock_forward(x, kp, has_res=has_res, use_bf16=True))
    ref = resblock_ref(x, tp, has_res)
    assert out.shape == (N, COUT, L)
    err_a = float(jnp.max(jnp.abs(out - ref)))
    assert jnp.allclose(out, ref, atol=5e-2, rtol=5e-2), f"case A max abs err {err_a}"

    # Case B: Cin == Cout -> identity residual (matmul specialized away), f32 operands.
    N, C, L = 4, 8, 16
    x = jax.random.normal(k3, (N, C, L), jnp.float32)
    kp, tp, has_res = make_params(k4, C, C, use_bf16=False)
    out = jax.block_until_ready(
        resblock_forward(x, kp, has_res=has_res, use_bf16=False))
    ref = resblock_ref(x, tp, has_res)
    assert out.shape == (N, C, L)
    err_b = float(jnp.max(jnp.abs(out - ref)))
    assert jnp.allclose(out, ref, atol=1e-3, rtol=1e-3), f"case B max abs err {err_b}"

    print("KERNEL_OK")
</pallas_src>

<mosaic_0001>
module attributes {stable_mosaic.version = 11 : i64} {
  func.func @kernel(%arg0: i32, %arg1: memref<2x16x4xf32, #tpu.memory_space<vmem>>, %arg2: memref<12x8xbf16, #tpu.memory_space<vmem>>, %arg3: memref<1x8xf32, #tpu.memory_space<vmem>>, %arg4: memref<1x8xf32, #tpu.memory_space<vmem>>, %arg5: memref<1x8xf32, #tpu.memory_space<vmem>>, %arg6: memref<24x8xbf16, #tpu.memory_space<vmem>>, %arg7: memref<1x8xf32, #tpu.memory_space<vmem>>, %arg8: memref<1x8xf32, #tpu.memory_space<vmem>>, %arg9: memref<1x8xf32, #tpu.memory_space<vmem>>, %arg10: memref<4x8xbf16, #tpu.memory_space<vmem>>, %arg11: memref<1x8xf32, #tpu.memory_space<vmem>>, %arg12: memref<2x16x8xf32, #tpu.memory_space<vmem>>) attributes {dimension_semantics = [#tpu.dimension_semantics<parallel>], iteration_bounds = array<i64: 2>, scalar_prefetch = 0 : i64, scratch_operands = 0 : i64, tpu.core_type = #tpu.core_type<tc>, window_params = [{transform_indices = @transform_0, window_bounds = array<i64: 2, 16, 4>}, {pipeline_mode = #tpu.pipeline_mode<synchronous>, transform_indices = @transform_1, window_bounds = array<i64: 12, 8>}, {pipeline_mode = #tpu.pipeline_mode<synchronous>, transform_indices = @transform_2, window_bounds = array<i64: 1, 8>}, {pipeline_mode = #tpu.pipeline_mode<synchronous>, transform_indices = @transform_3, window_bounds = array<i64: 1, 8>}, {pipeline_mode = #tpu.pipeline_mode<synchronous>, transform_indices = @transform_4, window_bounds = array<i64: 1, 8>}, {pipeline_mode = #tpu.pipeline_mode<synchronous>, transform_indices = @transform_5, window_bounds = array<i64: 24, 8>}, {pipeline_mode = #tpu.pipeline_mode<synchronous>, transform_indices = @transform_6, window_bounds = array<i64: 1, 8>}, {pipeline_mode = #tpu.pipeline_mode<synchronous>, transform_indices = @transform_7, window_bounds = array<i64: 1, 8>}, {pipeline_mode = #tpu.pipeline_mode<synchronous>, transform_indices = @transform_8, window_bounds = array<i64: 1, 8>}, {pipeline_mode = #tpu.pipeline_mode<synchronous>, transform_indices = @transform_9, window_bounds = array<i64: 4, 8>}, {pipeline_mode = #tpu.pipeline_mode<synchronous>, transform_indices = @transform_10, window_bounds = array<i64: 1, 8>}, {transform_indices = @transform_11, window_bounds = array<i64: 2, 16, 8>}]} {
    %c0 = arith.constant 0 : index
    %c0_0 = arith.constant 0 : index
    %c0_1 = arith.constant 0 : index
    %0 = vector.load %arg1[%c0, %c0_0, %c0_1] : memref<2x16x4xf32, #tpu.memory_space<vmem>>, vector<2x16x4xf32>
    %cst = arith.constant 0.000000e+00 : f32
    %1 = vector.broadcast %cst : f32 to vector<2x1x4xf32>
    %2 = tpu.concatenate %1, %0, %1 in 1 : vector<2x1x4xf32>, vector<2x16x4xf32>, vector<2x1x4xf32> -> vector<2x18x4xf32>
    %3 = vector.extract_strided_slice %2 {offsets = [0, 0, 0], sizes = [2, 16, 4], strides = [1, 1, 1]} : vector<2x18x4xf32> to vector<2x16x4xf32>
    %4 = vector.extract_strided_slice %2 {offsets = [0, 2, 0], sizes = [2, 16, 4], strides = [1, 1, 1]} : vector<2x18x4xf32> to vector<2x16x4xf32>
    %5 = tpu.concatenate %3, %0, %4 in 2 : vector<2x16x4xf32>, vector<2x16x4xf32>, vector<2x16x4xf32> -> vector<2x16x12xf32>
    %6 = arith.truncf %5 : vector<2x16x12xf32> to vector<2x16x12xbf16>
    %7 = vector.shape_cast %6 : vector<2x16x12xbf16> to vector<32x12xbf16>
    %c0_2 = arith.constant 0 : index
    %c0_3 = arith.constant 0 : index
    %8 = vector.load %arg2[%c0_2, %c0_3] : memref<12x8xbf16, #tpu.memory_space<vmem>>, vector<12x8xbf16>
    %cst_4 = arith.constant dense<0.000000e+00> : vector<32x8xf32>
    %9 = tpu.matmul %7, %8, %cst_4 {dimension_numbers = #tpu.dot_dimension_numbers<[1], [0], [0], [1], [0, 0, 1, 1], [], []>} : vector<32x12xbf16>, vector<12x8xbf16>, vector<32x8xf32> -> vector<32x8xf32>
    %c0_5 = arith.constant 0 : index
    %c0_6 = arith.constant 0 : index
    %10 = vector.load %arg3[%c0_5, %c0_6] : memref<1x8xf32, #tpu.memory_space<vmem>>, vector<1x8xf32>
    %11 = vector.broadcast %10 : vector<1x8xf32> to vector<32x8xf32>
    %12 = arith.addf %9, %11 : vector<32x8xf32>
    %13 = vector.shape_cast %12 : vector<32x8xf32> to vector<2x16x8xf32>
    %c0_7 = arith.constant 0 : index
    %c0_8 = arith.constant 0 : index
    %14 = vector.load %arg4[%c0_7, %c0_8] : memref<1x8xf32, #tpu.memory_space<vmem>>, vector<1x8xf32>
    %c0_9 = arith.constant 0 : index
    %c0_10 = arith.constant 0 : index
    %15 = vector.load %arg5[%c0_9, %c0_10] : memref<1x8xf32, #tpu.memory_space<vmem>>, vector<1x8xf32>
    %cst_11 = arith.constant dense<0.000000e+00> : vector<2x16xf32>
    %16 = vector.multi_reduction <add>, %13, %cst_11 [2] : vector<2x16x8xf32> to vector<2x16xf32>
    %17 = vector.shape_cast %16 : vector<2x16xf32> to vector<2x16x1xf32>
    %cst_12 = arith.constant dense<0.000000e+00> : vector<2x1xf32>
    %18 = vector.multi_reduction <add>, %17, %cst_12 [1] : vector<2x16x1xf32> to vector<2x1xf32>
    %19 = vector.shape_cast %18 : vector<2x1xf32> to vector<2x1x1xf32>
    %20 = arith.mulf %13, %13 : vector<2x16x8xf32>
    %cst_13 = arith.constant dense<0.000000e+00> : vector<2x16xf32>
    %21 = vector.multi_reduction <add>, %20, %cst_13 [2] : vector<2x16x8xf32> to vector<2x16xf32>
    %22 = vector.shape_cast %21 : vector<2x16xf32> to vector<2x16x1xf32>
    %cst_14 = arith.constant dense<0.000000e+00> : vector<2x1xf32>
    %23 = vector.multi_reduction <add>, %22, %cst_14 [1] : vector<2x16x1xf32> to vector<2x1xf32>
    %24 = vector.shape_cast %23 : vector<2x1xf32> to vector<2x1x1xf32>
    %cst_15 = arith.constant 1.280000e+02 : f32
    %25 = vector.broadcast %cst_15 : f32 to vector<2x1x1xf32>
    %26 = arith.divf %19, %25 : vector<2x1x1xf32>
    %cst_16 = arith.constant 1.280000e+02 : f32
    %27 = vector.broadcast %cst_16 : f32 to vector<2x1x1xf32>
    %28 = arith.divf %24, %27 : vector<2x1x1xf32>
    %29 = arith.mulf %26, %26 : vector<2x1x1xf32>
    %30 = arith.subf %28, %29 : vector<2x1x1xf32>
    %cst_17 = arith.constant 0.000000e+00 : f32
    %31 = vector.broadcast %cst_17 : f32 to vector<2x1x1xf32>
    %32 = arith.maximumf %30, %31 : vector<2x1x1xf32>
    %cst_18 = arith.constant 9.99999974E-6 : f32
    %33 = vector.broadcast %cst_18 : f32 to vector<2x1x1xf32>
    %34 = arith.addf %32, %33 : vector<2x1x1xf32>
    %35 = math.rsqrt %34 : vector<2x1x1xf32>
    %36 = vector.broadcast %26 : vector<2x1x1xf32> to vector<2x16x8xf32>
    %37 = arith.subf %13, %36 : vector<2x16x8xf32>
    %38 = vector.broadcast %35 : vector<2x1x1xf32> to vector<2x16x8xf32>
    %39 = arith.mulf %37, %38 : vector<2x16x8xf32>
    %40 = vector.shape_cast %14 : vector<1x8xf32> to vector<1x1x8xf32>
    %41 = vector.broadcast %40 : vector<1x1x8xf32> to vector<2x16x8xf32>
    %42 = arith.mulf %39, %41 : vector<2x16x8xf32>
    %43 = vector.shape_cast %15 : vector<1x8xf32> to vector<1x1x8xf32>
    %44 = vector.broadcast %43 : vector<1x1x8xf32> to vector<2x16x8xf32>
    %45 = arith.addf %42, %44 : vector<2x16x8xf32>
    %cst_19 = arith.constant 0.000000e+00 : f32
    %46 = vector.broadcast %cst_19 : f32 to vector<2x16x8xf32>
    %47 = arith.cmpf ogt, %45, %46 : vector<2x16x8xf32>
    %cst_20 = arith.constant 2.000000e-01 : f32
    %48 = vector.broadcast %cst_20 : f32 to vector<2x16x8xf32>
    %49 = arith.mulf %48, %45 : vector<2x16x8xf32>
    %50 = arith.select %47, %45, %49 : vector<2x16x8xi1>, vector<2x16x8xf32>
    %cst_21 = arith.constant 0.000000e+00 : f32
    %51 = vector.broadcast %cst_21 : f32 to vector<2x1x8xf32>
    %52 = tpu.concatenate %51, %50, %51 in 1 : vector<2x1x8xf32>, vector<2x16x8xf32>, vector<2x1x8xf32> -> vector<2x18x8xf32>
    %53 = vector.extract_strided_slice %52 {offsets = [0, 0, 0], sizes = [2, 16, 8], strides = [1, 1, 1]} : vector<2x18x8xf32> to vector<2x16x8xf32>
    %54 = vector.extract_strided_slice %52 {offsets = [0, 2, 0], sizes = [2, 16, 8], strides = [1, 1, 1]} : vector<2x18x8xf32> to vector<2x16x8xf32>
    %55 = tpu.concatenate %53, %50, %54 in 2 : vector<2x16x8xf32>, vector<2x16x8xf32>, vector<2x16x8xf32> -> vector<2x16x24xf32>
    %56 = arith.truncf %55 : vector<2x16x24xf32> to vector<2x16x24xbf16>
    %57 = vector.shape_cast %56 : vector<2x16x24xbf16> to vector<32x24xbf16>
    %c0_22 = arith.constant 0 : index
    %c0_23 = arith.constant 0 : index
    %58 = vector.load %arg6[%c0_22, %c0_23] : memref<24x8xbf16, #tpu.memory_space<vmem>>, vector<24x8xbf16>
    %cst_24 = arith.constant dense<0.000000e+00> : vector<32x8xf32>
    %59 = tpu.matmul %57, %58, %cst_24 {dimension_numbers = #tpu.dot_dimension_numbers<[1], [0], [0], [1], [0, 0, 1, 1], [], []>} : vector<32x24xbf16>, vector<24x8xbf16>, vector<32x8xf32> -> vector<32x8xf32>
    %c0_25 = arith.constant 0 : index
    %c0_26 = arith.constant 0 : index
    %60 = vector.load %arg7[%c0_25, %c0_26] : memref<1x8xf32, #tpu.memory_space<vmem>>, vector<1x8xf32>
    %61 = vector.broadcast %60 : vector<1x8xf32> to vector<32x8xf32>
    %62 = arith.addf %59, %61 : vector<32x8xf32>
    %63 = vector.shape_cast %62 : vector<32x8xf32> to vector<2x16x8xf32>
    %c0_27 = arith.constant 0 : index
    %c0_28 = arith.constant 0 : index
    %64 = vector.load %arg8[%c0_27, %c0_28] : memref<1x8xf32, #tpu.memory_space<vmem>>, vector<1x8xf32>
    %c0_29 = arith.constant 0 : index
    %c0_30 = arith.constant 0 : index
    %65 = vector.load %arg9[%c0_29, %c0_30] : memref<1x8xf32, #tpu.memory_space<vmem>>, vector<1x8xf32>
    %cst_31 = arith.constant dense<0.000000e+00> : vector<2x16xf32>
    %66 = vector.multi_reduction <add>, %63, %cst_31 [2] : vector<2x16x8xf32> to vector<2x16xf32>
    %67 = vector.shape_cast %66 : vector<2x16xf32> to vector<2x16x1xf32>
    %cst_32 = arith.constant dense<0.000000e+00> : vector<2x1xf32>
    %68 = vector.multi_reduction <add>, %67, %cst_32 [1] : vector<2x16x1xf32> to vector<2x1xf32>
    %69 = vector.shape_cast %68 : vector<2x1xf32> to vector<2x1x1xf32>
    %70 = arith.mulf %63, %63 : vector<2x16x8xf32>
    %cst_33 = arith.constant dense<0.000000e+00> : vector<2x16xf32>
    %71 = vector.multi_reduction <add>, %70, %cst_33 [2] : vector<2x16x8xf32> to vector<2x16xf32>
    %72 = vector.shape_cast %71 : vector<2x16xf32> to vector<2x16x1xf32>
    %cst_34 = arith.constant dense<0.000000e+00> : vector<2x1xf32>
    %73 = vector.multi_reduction <add>, %72, %cst_34 [1] : vector<2x16x1xf32> to vector<2x1xf32>
    %74 = vector.shape_cast %73 : vector<2x1xf32> to vector<2x1x1xf32>
    %cst_35 = arith.constant 1.280000e+02 : f32
    %75 = vector.broadcast %cst_35 : f32 to vector<2x1x1xf32>
    %76 = arith.divf %69, %75 : vector<2x1x1xf32>
    %cst_36 = arith.constant 1.280000e+02 : f32
    %77 = vector.broadcast %cst_36 : f32 to vector<2x1x1xf32>
    %78 = arith.divf %74, %77 : vector<2x1x1xf32>
    %79 = arith.mulf %76, %76 : vector<2x1x1xf32>
    %80 = arith.subf %78, %79 : vector<2x1x1xf32>
    %cst_37 = arith.constant 0.000000e+00 : f32
    %81 = vector.broadcast %cst_37 : f32 to vector<2x1x1xf32>
    %82 = arith.maximumf %80, %81 : vector<2x1x1xf32>
    %cst_38 = arith.constant 9.99999974E-6 : f32
    %83 = vector.broadcast %cst_38 : f32 to vector<2x1x1xf32>
    %84 = arith.addf %82, %83 : vector<2x1x1xf32>
    %85 = math.rsqrt %84 : vector<2x1x1xf32>
    %86 = vector.broadcast %76 : vector<2x1x1xf32> to vector<2x16x8xf32>
    %87 = arith.subf %63, %86 : vector<2x16x8xf32>
    %88 = vector.broadcast %85 : vector<2x1x1xf32> to vector<2x16x8xf32>
    %89 = arith.mulf %87, %88 : vector<2x16x8xf32>
    %90 = vector.shape_cast %64 : vector<1x8xf32> to vector<1x1x8xf32>
    %91 = vector.broadcast %90 : vector<1x1x8xf32> to vector<2x16x8xf32>
    %92 = arith.mulf %89, %91 : vector<2x16x8xf32>
    %93 = vector.shape_cast %65 : vector<1x8xf32> to vector<1x1x8xf32>
    %94 = vector.broadcast %93 : vector<1x1x8xf32> to vector<2x16x8xf32>
    %95 = arith.addf %92, %94 : vector<2x16x8xf32>
    %96 = arith.truncf %0 : vector<2x16x4xf32> to vector<2x16x4xbf16>
    %97 = vector.shape_cast %96 : vector<2x16x4xbf16> to vector<32x4xbf16>
    %c0_39 = arith.constant 0 : index
    %c0_40 = arith.constant 0 : index
    %98 = vector.load %arg10[%c0_39, %c0_40] : memref<4x8xbf16, #tpu.memory_space<vmem>>, vector<4x8xbf16>
    %cst_41 = arith.constant dense<0.000000e+00> : vector<32x8xf32>
    %99 = tpu.matmul %97, %98, %cst_41 {dimension_numbers = #tpu.dot_dimension_numbers<[1], [0], [0], [1], [0, 0, 1, 1], [], []>} : vector<32x4xbf16>, vector<4x8xbf16>, vector<32x8xf32> -> vector<32x8xf32>
    %c0_42 = arith.constant 0 : index
    %c0_43 = arith.constant 0 : index
    %100 = vector.load %arg11[%c0_42, %c0_43] : memref<1x8xf32, #tpu.memory_space<vmem>>, vector<1x8xf32>
    %101 = vector.broadcast %100 : vector<1x8xf32> to vector<32x8xf32>
    %102 = arith.addf %99, %101 : vector<32x8xf32>
    %103 = vector.shape_cast %102 : vector<32x8xf32> to vector<2x16x8xf32>
    %104 = arith.addf %95, %103 : vector<2x16x8xf32>
    %cst_44 = arith.constant 0.000000e+00 : f32
    %105 = vector.broadcast %cst_44 : f32 to vector<2x16x8xf32>
    %106 = arith.cmpf ogt, %104, %105 : vector<2x16x8xf32>
    %cst_45 = arith.constant 2.000000e-01 : f32
    %107 = vector.broadcast %cst_45 : f32 to vector<2x16x8xf32>
    %108 = arith.mulf %107, %104 : vector<2x16x8xf32>
    %109 = arith.select %106, %104, %108 : vector<2x16x8xi1>, vector<2x16x8xf32>
    %c0_46 = arith.constant 0 : index
    %c0_47 = arith.constant 0 : index
    %c0_48 = arith.constant 0 : index
    %110 = vector.load %arg12[%c0_46, %c0_47, %c0_48] : memref<2x16x8xf32, #tpu.memory_space<vmem>>, vector<2x16x8xf32>
    tpu.vector_store %arg12[%c0_46, %c0_47, %c0_48], %109 {strides = array<i32>} : memref<2x16x8xf32, #tpu.memory_space<vmem>>, vector<2x16x8xf32>,
    return
  }
  func.func @transform_0(%arg0: i32) -> (i32, i32, i32) {
    %c0_i32 = arith.constant 0 : i32
    %c0_i32_0 = arith.constant 0 : i32
    %c0_i32_1 = arith.constant 0 : i32
    return %arg0, %c0_i32, %c0_i32_0 : i32, i32, i32
  }
  func.func @transform_1(%arg0: i32) -> (i32, i32) {
    %c0_i32 = arith.constant 0 : i32
    %c0_i32_0 = arith.constant 0 : i32
    %c0_i32_1 = arith.constant 0 : i32
    return %c0_i32, %c0_i32_0 : i32, i32
  }
  func.func @transform_2(%arg0: i32) -> (i32, i32) {
    %c0_i32 = arith.constant 0 : i32
    %c0_i32_0 = arith.constant 0 : i32
    %c0_i32_1 = arith.constant 0 : i32
    return %c0_i32, %c0_i32_0 : i32, i32
  }
  func.func @transform_3(%arg0: i32) -> (i32, i32) {
    %c0_i32 = arith.constant 0 : i32
    %c0_i32_0 = arith.constant 0 : i32
    %c0_i32_1 = arith.constant 0 : i32
    return %c0_i32, %c0_i32_0 : i32, i32
  }
  func.func @transform_4(%arg0: i32) -> (i32, i32) {
    %c0_i32 = arith.constant 0 : i32
    %c0_i32_0 = arith.constant 0 : i32
    %c0_i32_1 = arith.constant 0 : i32
    return %c0_i32, %c0_i32_0 : i32, i32
  }
  func.func @transform_5(%arg0: i32) -> (i32, i32) {
    %c0_i32 = arith.constant 0 : i32
    %c0_i32_0 = arith.constant 0 : i32
    %c0_i32_1 = arith.constant 0 : i32
    return %c0_i32, %c0_i32_0 : i32, i32
  }
  func.func @transform_6(%arg0: i32) -> (i32, i32) {
    %c0_i32 = arith.constant 0 : i32
    %c0_i32_0 = arith.constant 0 : i32
    %c0_i32_1 = arith.constant 0 : i32
    return %c0_i32, %c0_i32_0 : i32, i32
  }
  func.func @transform_7(%arg0: i32) -> (i32, i32) {
    %c0_i32 = arith.constant 0 : i32
    %c0_i32_0 = arith.constant 0 : i32
    %c0_i32_1 = arith.constant 0 : i32
    return %c0_i32, %c0_i32_0 : i32, i32
  }
  func.func @transform_8(%arg0: i32) -> (i32, i32) {
    %c0_i32 = arith.constant 0 : i32
    %c0_i32_0 = arith.constant 0 : i32
    %c0_i32_1 = arith.constant 0 : i32
    return %c0_i32, %c0_i32_0 : i32, i32
  }
  func.func @transform_9(%arg0: i32) -> (i32, i32) {
    %c0_i32 = arith.constant 0 : i32
    %c0_i32_0 = arith.constant 0 : i32
    %c0_i32_1 = arith.constant 0 : i32
    return %c0_i32, %c0_i32_0 : i32, i32
  }
  func.func @transform_10(%arg0: i32) -> (i32, i32) {
    %c0_i32 = arith.constant 0 : i32
    %c0_i32_0 = arith.constant 0 : i32
    %c0_i32_1 = arith.constant 0 : i32
    return %c0_i32, %c0_i32_0 : i32, i32
  }
  func.func @transform_11(%arg0: i32) -> (i32, i32, i32) {
    %c0_i32 = arith.constant 0 : i32
    %c0_i32_0 = arith.constant 0 : i32
    %c0_i32_1 = arith.constant 0 : i32
    return %arg0, %c0_i32, %c0_i32_0 : i32, i32, i32
  }
}

</mosaic_0001>

<llo_original>
// kernel: tpu_custom_call.1
$region0: #{tpu_custom_call.1}
  #allocation0 [shape = 'u32[]', space=smem, size = 0x4, offset = 0x4, fixed_abs, tag = 'smem constant byte address 0x4 - core index']
  #allocation1 [shape = 'u32[144,128]{1,0:T(1,128)}', space=vmem, size = 0x12000, scoped, tag = 'internal scratch']
  %s0 = inlined_call_operand.vmem [shape: f32[4,16,4], index: 0, kind: input, shape index: {}]
  %s1 = inlined_call_operand.vmem [shape: bf16[12,8], index: 1, kind: input, shape index: {}]
  %s2 = inlined_call_operand.vmem [shape: f32[1,8], index: 2, kind: input, shape index: {}]
  %s3 = inlined_call_operand.vmem [shape: f32[1,8], index: 3, kind: input, shape index: {}]
  %s4 = inlined_call_operand.vmem [shape: f32[1,8], index: 4, kind: input, shape index: {}]
  %s5 = inlined_call_operand.vmem [shape: bf16[24,8], index: 5, kind: input, shape index: {}]
  %s6 = inlined_call_operand.vmem [shape: f32[1,8], index: 6, kind: input, shape index: {}]
  %s7 = inlined_call_operand.vmem [shape: f32[1,8], index: 7, kind: input, shape index: {}]
  %s8 = inlined_call_operand.vmem [shape: f32[1,8], index: 8, kind: input, shape index: {}]
  %s9 = inlined_call_operand.vmem [shape: bf16[4,8], index: 9, kind: input, shape index: {}]
  %s10 = inlined_call_operand.vmem [shape: f32[1,8], index: 10, kind: input, shape index: {}]
  %s11 = inlined_call_operand.vmem [shape: f32[4,16,8], index: 11, kind: output, shape index: {}]
  %s12 = sld [smem:[#allocation0]]
  $region77: #{tpu_custom_call.1} parent=0
    _
  %s14 = ssub.s32 1, %s12
  %s15 = scalar_select 0, %s14, %s12
  loop: start=0, step=1, limit=4
  $region2: #{tpu_custom_call.1} parent=0 // loop_pre_header
    _
  $region3: #{tpu_custom_call.1} parent=0 // loop_header
    %s17 = sphi 0, %s21
    %p18 = scmp.ge.s32.totalorder %s17, 4
    %s27 = sphi 0, %s29
    %s30 = sphi 0, %s27
    %s31 = sphi 0, %s30
    %s47 = sphi 0, %s31
    %s51 = sphi 0, %s51
    %s53 = sphi 0, %s51
    %s54 = sphi 0, %s53
    %s68 = sphi 0, %s54
    %s72 = sphi 0, %s72
    %s74 = sphi 0, %s72
    %s75 = sphi 0, %s74
    %s89 = sphi 0, %s75
    %s93 = sphi 0, %s93
    %s95 = sphi 0, %s93
    %s96 = sphi 0, %s95
    %s110 = sphi 0, %s96
    %s114 = sphi 0, %s114
    %s116 = sphi 0, %s114
    %s117 = sphi 0, %s116
    %s131 = sphi 0, %s117
    %s135 = sphi 0, %s135
    %s137 = sphi 0, %s135
    %s138 = sphi 0, %s137
    %s152 = sphi 0, %s138
    %s156 = sphi 0, %s156
    %s158 = sphi 0, %s156
    %s159 = sphi 0, %s158
    %s173 = sphi 0, %s159
    %s177 = sphi 0, %s177
    %s179 = sphi 0, %s177
    %s180 = sphi 0, %s179
    %s194 = sphi 0, %s180
    %s198 = sphi 0, %s198
    %s200 = sphi 0, %s198
    %s201 = sphi 0, %s200
    %s215 = sphi 0, %s201
    %s219 = sphi 0, %s219
    %s221 = sphi 0, %s219
    %s222 = sphi 0, %s221
    %s236 = sphi 0, %s222
    %s240 = sphi 0, %s240
    %s242 = sphi 0, %s240
    %s243 = sphi 0, %s242
    %s257 = sphi 0, %s243
    %s263 = sphi 0, %s265
    %s266 = sphi 0, %s263
    %s267 = sphi 0, %s266
    %s283 = sphi 0, %s267
  $region4: #{tpu_custom_call.1} parent=0 // loop_header_branch
    %20 = sbr.rel (%p18) target = $region8
  $region5: #{tpu_custom_call.1} parent=0 // loop_body
    %s22 = ssub.s32 %s17, 1
    %s23 = ssub.s32 %s17, 2
    %s24 = sadd.s32 %s17, 1
    %s25 = ssub.s32 %s17, %s24
    %p26 = scmp.eq.s32.totalorder %s25, 0
    %s28 = sadd.s32 %s27, 1
    %s29 = scalar_select %p26, %s27, %s28
    %p32 = pneg %p26
    %p33 = scmp.eq.s32.totalorder %s17, 1
    %p34 = por %p32, %p33
    %p35 = scmp.ne.s32.totalorder %s27, %s30
    %p36 = scmp.eq.s32.totalorder %s17, 0
    %p37 = por %p35, %p36
    %p38 = scmp.ne.s32.totalorder %s27, %s30
    %p39 = scmp.eq.s32.totalorder %s22, 1
    %p40 = por %p38, %p39
    %p41 = scmp.ne.s32.totalorder %s30, %s31
    %p42 = scmp.eq.s32.totalorder %s22, 0
    %p43 = por %p41, %p42
    %p44 = scmp.ne.s32.totalorder %s30, %s31
    %p45 = scmp.eq.s32.totalorder %s23, 1
    %p46 = por %p44, %p45
    %p48 = scmp.ne.s32.totalorder %s31, %s47
    %p49 = scmp.eq.s32.totalorder %s23, 0
    %p50 = por %p48, %p49
    %s52 = sadd.s32 %s51, 1
    %p55 = scmp.eq.s32.totalorder %s17, 1
    %p56 = scmp.ne.s32.totalorder %s51, %s53
    %p57 = scmp.eq.s32.totalorder %s17, 0
    %p58 = por %p56, %p57
    %p59 = scmp.ne.s32.totalorder %s51, %s53
    %p60 = scmp.eq.s32.totalorder %s22, 1
    %p61 = por %p59, %p60
    %p62 = scmp.ne.s32.totalorder %s53, %s54
    %p63 = scmp.eq.s32.totalorder %s22, 0
    %p64 = por %p62, %p63
    %p65 = scmp.ne.s32.totalorder %s53, %s54
    %p66 = scmp.eq.s32.totalorder %s23, 1
    %p67 = por %p65, %p66
    %p69 = scmp.ne.s32.totalorder %s54, %s68
    %p70 = scmp.eq.s32.totalorder %s23, 0
    %p71 = por %p69, %p70
    %s73 = sadd.s32 %s72, 1
    %p76 = scmp.eq.s32.totalorder %s17, 1
    %p77 = scmp.ne.s32.totalorder %s72, %s74
    %p78 = scmp.eq.s32.totalorder %s17, 0
    %p79 = por %p77, %p78
    %p80 = scmp.ne.s32.totalorder %s72, %s74
    %p81 = scmp.eq.s32.totalorder %s22, 1
    %p82 = por %p80, %p81
    %p83 = scmp.ne.s32.totalorder %s74, %s75
    %p84 = scmp.eq.s32.totalorder %s22, 0
    %p85 = por %p83, %p84
    %p86 = scmp.ne.s32.totalorder %s74, %s75
    %p87 = scmp.eq.s32.totalorder %s23, 1
    %p88 = por %p86, %p87
    %p90 = scmp.ne.s32.totalorder %s75, %s89
    %p91 = scmp.eq.s32.totalorder %s23, 0
    %p92 = por %p90, %p91
    %s94 = sadd.s32 %s93, 1
    %p97 = scmp.eq.s32.totalorder %s17, 1
    %p98 = scmp.ne.s32.totalorder %s93, %s95
    %p99 = scmp.eq.s32.totalorder %s17, 0
    %p100 = por %p98, %p99
    %p101 = scmp.ne.s32.totalorder %s93, %s95
    %p102 = scmp.eq.s32.totalorder %s22, 1
    %p103 = por %p101, %p102
    %p104 = scmp.ne.s32.totalorder %s95, %s96
    %p105 = scmp.eq.s32.totalorder %s22, 0
    %p106 = por %p104, %p105
    %p107 = scmp.ne.s32.totalorder %s95, %s96
    %p108 = scmp.eq.s32.totalorder %s23, 1
    %p109 = por %p107, %p108
    %p111 = scmp.ne.s32.totalorder %s96, %s110
    %p112 = scmp.eq.s32.totalorder %s23, 0
    %p113 = por %p111, %p112
    %s115 = sadd.s32 %s114, 1
    %p118 = scmp.eq.s32.totalorder %s17, 1
    %p119 = scmp.ne.s32.totalorder %s114, %s116
    %p120 = scmp.eq.s32.totalorder %s17, 0
    %p121 = por %p119, %p120
    %p122 = scmp.ne.s32.totalorder %s114, %s116
    %p123 = scmp.eq.s32.totalorder %s22, 1
    %p124 = por %p122, %p123
    %p125 = scmp.ne.s32.totalorder %s116, %s117
    %p126 = scmp.eq.s32.totalorder %s22, 0
    %p127 = por %p125, %p126
    %p128 = scmp.ne.s32.totalorder %s116, %s117
    %p129 = scmp.eq.s32.totalorder %s23, 1
    %p130 = por %p128, %p129
    %p132 = scmp.ne.s32.totalorder %s117, %s131
    %p133 = scmp.eq.s32.totalorder %s23, 0
    %p134 = por %p132, %p133
    %s136 = sadd.s32 %s135, 1
    %p139 = scmp.eq.s32.totalorder %s17, 1
    %p140 = scmp.ne.s32.totalorder %s135, %s137
    %p141 = scmp.eq.s32.totalorder %s17, 0
    %p142 = por %p140, %p141
    %p143 = scmp.ne.s32.totalorder %s135, %s137
    %p144 = scmp.eq.s32.totalorder %s22, 1
    %p145 = por %p143, %p144
    %p146 = scmp.ne.s32.totalorder %s137, %s138
    %p147 = scmp.eq.s32.totalorder %s22, 0
    %p148 = por %p146, %p147
    %p149 = scmp.ne.s32.totalorder %s137, %s138
    %p150 = scmp.eq.s32.totalorder %s23, 1
    %p151 = por %p149, %p150
    %p153 = scmp.ne.s32.totalorder %s138, %s152
    %p154 = scmp.eq.s32.totalorder %s23, 0
    %p155 = por %p153, %p154
    %s157 = sadd.s32 %s156, 1
    %p160 = scmp.eq.s32.totalorder %s17, 1
    %p161 = scmp.ne.s32.totalorder %s156, %s158
    %p162 = scmp.eq.s32.totalorder %s17, 0
    %p163 = por %p161, %p162
    %p164 = scmp.ne.s32.totalorder %s156, %s158
    %p165 = scmp.eq.s32.totalorder %s22, 1
    %p166 = por %p164, %p165
    %p167 = scmp.ne.s32.totalorder %s158, %s159
    %p168 = scmp.eq.s32.totalorder %s22, 0
    %p169 = por %p167, %p168
    %p170 = scmp.ne.s32.totalorder %s158, %s159
    %p171 = scmp.eq.s32.totalorder %s23, 1
    %p172 = por %p170, %p171
    %p174 = scmp.ne.s32.totalorder %s159, %s173
    %p175 = scmp.eq.s32.totalorder %s23, 0
    %p176 = por %p174, %p175
    %s178 = sadd.s32 %s177, 1
    %p181 = scmp.eq.s32.totalorder %s17, 1
    %p182 = scmp.ne.s32.totalorder %s177, %s179
    %p183 = scmp.eq.s32.totalorder %s17, 0
    %p184 = por %p182, %p183
    %p185 = scmp.ne.s32.totalorder %s177, %s179
    %p186 = scmp.eq.s32.totalorder %s22, 1
    %p187 = por %p185, %p186
    %p188 = scmp.ne.s32.totalorder %s179, %s180
    %p189 = scmp.eq.s32.totalorder %s22, 0
    %p190 = por %p188, %p189
    %p191 = scmp.ne.s32.totalorder %s179, %s180
    %p192 = scmp.eq.s32.totalorder %s23, 1
    %p193 = por %p191, %p192
    %p195 = scmp.ne.s32.totalorder %s180, %s194
    %p196 = scmp.eq.s32.totalorder %s23, 0
    %p197 = por %p195, %p196
    %s199 = sadd.s32 %s198, 1
    %p202 = scmp.eq.s32.totalorder %s17, 1
    %p203 = scmp.ne.s32.totalorder %s198, %s200
    %p204 = scmp.eq.s32.totalorder %s17, 0
    %p205 = por %p203, %p204
    %p206 = scmp.ne.s32.totalorder %s198, %s200
    %p207 = scmp.eq.s32.totalorder %s22, 1
    %p208 = por %p206, %p207
    %p209 = scmp.ne.s32.totalorder %s200, %s201
    %p210 = scmp.eq.s32.totalorder %s22, 0
    %p211 = por %p209, %p210
    %p212 = scmp.ne.s32.totalorder %s200, %s201
    %p213 = scmp.eq.s32.totalorder %s23, 1
    %p214 = por %p212, %p213
    %p216 = scmp.ne.s32.totalorder %s201, %s215
    %p217 = scmp.eq.s32.totalorder %s23, 0
    %p218 = por %p216, %p217
    %s220 = sadd.s32 %s219, 1
    %p223 = scmp.eq.s32.totalorder %s17, 1
    %p224 = scmp.ne.s32.totalorder %s219, %s221
    %p225 = scmp.eq.s32.totalorder %s17, 0
    %p226 = por %p224, %p225
    %p227 = scmp.ne.s32.totalorder %s219, %s221
    %p228 = scmp.eq.s32.totalorder %s22, 1
    %p229 = por %p227, %p228
    %p230 = scmp.ne.s32.totalorder %s221, %s222
    %p231 = scmp.eq.s32.totalorder %s22, 0
    %p232 = por %p230, %p231
    %p233 = scmp.ne.s32.totalorder %s221, %s222
    %p234 = scmp.eq.s32.totalorder %s23, 1
    %p235 = por %p233, %p234
    %p237 = scmp.ne.s32.totalorder %s222, %s236
    %p238 = scmp.eq.s32.totalorder %s23, 0
    %p239 = por %p237, %p238
    %s241 = sadd.s32 %s240, 1
    %p244 = scmp.eq.s32.totalorder %s17, 1
    %p245 = scmp.ne.s32.totalorder %s240, %s242
    %p246 = scmp.eq.s32.totalorder %s17, 0
    %p247 = por %p245, %p246
    %p248 = scmp.ne.s32.totalorder %s240, %s242
    %p249 = scmp.eq.s32.totalorder %s22, 1
    %p250 = por %p248, %p249
    %p251 = scmp.ne.s32.totalorder %s242, %s243
    %p252 = scmp.eq.s32.totalorder %s22, 0
    %p253 = por %p251, %p252
    %p254 = scmp.ne.s32.totalorder %s242, %s243
    %p255 = scmp.eq.s32.totalorder %s23, 1
    %p256 = por %p254, %p255
    %p258 = scmp.ne.s32.totalorder %s243, %s257
    %p259 = scmp.eq.s32.totalorder %s23, 0
    %p260 = por %p258, %p259
    %s261 = ssub.s32 %s17, %s24
    %p262 = scmp.eq.s32.totalorder %s261, 0
    %s264 = sadd.s32 %s263, 1
    %s265 = scalar_select %p262, %s263, %s264
    %p268 = pneg %p262
    %p269 = scmp.eq.s32.totalorder %s17, 1
    %p270 = por %p268, %p269
    %p271 = scmp.ne.s32.totalorder %s263, %s266
    %p272 = scmp.eq.s32.totalorder %s17, 0
    %p273 = por %p271, %p272
    %p274 = scmp.ne.s32.totalorder %s263, %s266
    %p275 = scmp.eq.s32.totalorder %s22, 1
    %p276 = por %p274, %p275
    %p277 = scmp.ne.s32.totalorder %s266, %s267
    %p278 = scmp.eq.s32.totalorder %s22, 0
    %p279 = por %p277, %p278
    %p280 = scmp.ne.s32.totalorder %s266, %s267
    %p281 = scmp.eq.s32.totalorder %s23, 1
    %p282 = por %p280, %p281
    %p284 = scmp.ne.s32.totalorder %s267, %s283
    %p285 = scmp.eq.s32.totalorder %s23, 0
    %p286 = por %p284, %p285
    %p287 = scmp.le.s32.totalorder 1, %s17
    %p288 = scmp.lt.s32.totalorder %s17, 3
    %p289 = pnand %p287, %p288
    %p290 = pneg %p289
    // Predicated region
    $region9: #{tpu_custom_call.1} parent=5 // pred_check
      _
    $region10: #{tpu_custom_call.1} parent=5 // pred_check_branch
      %292 = sbr.rel (%p289) target = $region12
    $region11: #{tpu_custom_call.1} parent=5 // pred_region
      %s293 = ssub.s32 %s17, 1
      // Predicated region
      $region13: #{tpu_custom_call.1} parent=11 // pred_check
        %p294 = pneg %p64
      $region14: #{tpu_custom_call.1} parent=11 // pred_check_branch
        %296 = sbr.rel (%p294) target = $region16
      $region15: #{tpu_custom_call.1} parent=11 // pred_region
        _
      $region16: #{tpu_custom_call.1} parent=11 // pred_fallthru
        _
      // Predicated region
      $region17: #{tpu_custom_call.1} parent=11 // pred_check
        %p297 = pneg %p85
      $region18: #{tpu_custom_call.1} parent=11 // pred_check_branch
        %299 = sbr.rel (%p297) target = $region20
      $region19: #{tpu_custom_call.1} parent=11 // pred_region
        _
      $region20: #{tpu_custom_call.1} parent=11 // pred_fallthru
        _
      // Predicated region
      $region21: #{tpu_custom_call.1} parent=11 // pred_check
        %p300 = pneg %p106
      $region22: #{tpu_custom_call.1} parent=11 // pred_check_branch
        %302 = sbr.rel (%p300) target = $region24
      $region23: #{tpu_custom_call.1} parent=11 // pred_region
        _
      $region24: #{tpu_custom_call.1} parent=11 // pred_fallthru
        _
      // Predicated region
      $region25: #{tpu_custom_call.1} parent=11 // pred_check
        %p303 = pneg %p127
      $region26: #{tpu_custom_call.1} parent=11 // pred_check_branch
        %305 = sbr.rel (%p303) target = $region28
      $region27: #{tpu_custom_call.1} parent=11 // pred_region
        _
      $region28: #{tpu_custom_call.1} parent=11 // pred_fallthru
        _
      // Predicated region
      $region29: #{tpu_custom_call.1} parent=11 // pred_check
        %p306 = pneg %p148
      $region30: #{tpu_custom_call.1} parent=11 // pred_check_branch
        %308 = sbr.rel (%p306) target = $region32
      $region31: #{tpu_custom_call.1} parent=11 // pred_region
        _
      $region32: #{tpu_custom_call.1} parent=11 // pred_fallthru
        _
      // Predicated region
      $region33: #{tpu_custom_call.1} parent=11 // pred_check
        %p309 = pneg %p169
      $region34: #{tpu_custom_call.1} parent=11 // pred_check_branch
        %311 = sbr.rel (%p309) target = $region36
      $region35: #{tpu_custom_call.1} parent=11 // pred_region
        _
      $region36: #{tpu_custom_call.1} parent=11 // pred_fallthru
        _
      // Predicated region
      $region37: #{tpu_custom_call.1} parent=11 // pred_check
        %p312 = pneg %p190
      $region38: #{tpu_custom_call.1} parent=11 // pred_check_branch
        %314 = sbr.rel (%p312) target = $region40
      $region39: #{tpu_custom_call.1} parent=11 // pred_region
        _
      $region40: #{tpu_custom_call.1} parent=11 // pred_fallthru
        _
      // Predicated region
      $region41: #{tpu_custom_call.1} parent=11 // pred_check
        %p315 = pneg %p211
      $region42: #{tpu_custom_call.1} parent=11 // pred_check_branch
        %317 = sbr.rel (%p315) target = $region44
      $region43: #{tpu_custom_call.1} parent=11 // pred_region
        _
      $region44: #{tpu_custom_call.1} parent=11 // pred_fallthru
        _
      // Predicated region
      $region45: #{tpu_custom_call.1} parent=11 // pred_check
        %p318 = pneg %p232
      $region46: #{tpu_custom_call.1} parent=11 // pred_check_branch
        %320 = sbr.rel (%p318) target = $region48
      $region47: #{tpu_custom_call.1} parent=11 // pred_region
        _
      $region48: #{tpu_custom_call.1} parent=11 // pred_fallthru
        _
      // Predicated region
      $region49: #{tpu_custom_call.1} parent=11 // pred_check
        %p321 = pneg %p253
      $region50: #{tpu_custom_call.1} parent=11 // pred_check_branch
        %323 = sbr.rel (%p321) target = $region52
      $region51: #{tpu_custom_call.1} parent=11 // pred_region
        _
      $region52: #{tpu_custom_call.1} parent=11 // pred_fallthru
        _
    $region12: #{tpu_custom_call.1} parent=5 // pred_fallthru
      _
    %p324 = scmp.lt.s32.totalorder %s17, 2
    // Predicated region
    $region53: #{tpu_custom_call.1} parent=5 // pred_check
      %p325 = pneg %p324
    $region54: #{tpu_custom_call.1} parent=5 // pred_check_branch
      %327 = sbr.rel (%p325) target = $region56
    $region55: #{tpu_custom_call.1} parent=5 // pred_region
      // Predicated region
      $region57: #{tpu_custom_call.1} parent=55 // pred_check
        %p328 = pneg %p37
      $region58: #{tpu_custom_call.1} parent=55 // pred_check_branch
        %330 = sbr.rel (%p328) target = $region60
      $region59: #{tpu_custom_call.1} parent=55 // pred_region
        %s331 = smul.u32 2, %s17
        %p332 = scmp.lt.s32.totalorder %s331, 3
        %s333 = scalar_select %p332, %s331, 3
        %s334 = smul.addr %s333, 2
        %s335 = smul.addr %s334, 8
        %s336 = scalar_lea.vmem %s0, %s335
        %s337 = smul.u32 2, %s17
      $region60: #{tpu_custom_call.1} parent=55 // pred_fallthru
        _
    $region56: #{tpu_custom_call.1} parent=5 // pred_fallthru
      _
    %p338 = scmp.le.s32.totalorder 1, %s17
    %p339 = scmp.lt.s32.totalorder %s17, 3
    %p340 = pnand %p338, %p339
    %p341 = pneg %p340
    // Predicated region
    $region61: #{tpu_custom_call.1} parent=5 // pred_check
      _
    $region62: #{tpu_custom_call.1} parent=5 // pred_check_branch
      %343 = sbr.rel (%p340) target = $region64
    $region63: #{tpu_custom_call.1} parent=5 // pred_region
      %s344 = ssub.s32 %s17, 1
      %s345 = smul.u32 2, %s22
      %p346 = scmp.lt.s32.totalorder %s345, 3
      %s347 = scalar_select %p346, %s345, 3
      %s348 = smul.addr %s347, 2
      %s349 = smul.addr %s348, 8
      %s350 = scalar_lea.vmem %s0, %s349
      %p351 = pneg %p43
      %p352 = pneg %p40
      %p353 = pneg %p64
      %p354 = pneg %p61
      %p355 = pneg %p85
      %p356 = pneg %p82
      %p357 = pneg %p106
      %p358 = pneg %p103
      %p359 = pneg %p127
      %p360 = pneg %p124
      %p361 = pneg %p148
      %p362 = pneg %p145
      %p363 = pneg %p169
      %p364 = pneg %p166
      %p365 = pneg %p190
      %p366 = pneg %p187
      %p367 = pneg %p211
      %p368 = pneg %p208
      %p369 = pneg %p232
      %p370 = pneg %p229
      %p371 = pneg %p253
      %p372 = pneg %p250
      %p373 = pneg %p279
      %p374 = pneg %p276
      %s375 = smul.u32 2, %s22
      %p376 = scmp.lt.s32.totalorder %s375, 3
      %s377 = scalar_select %p376, %s375, 3
      %s378 = smul.addr %s377, 2
      %s379 = smul.addr %s378, 8
      %s380 = scalar_lea.vmem %s11, %s379
      %s381 = smul.u32 2, %s22
      %p382 = scmp.lt.s32.totalorder %s381, 3
      %s383 = scalar_select %p382, %s381, 3
      %s384 = smul.addr %s383, 2
      %s385 = smul.addr %s384, 8
      %s386 = scalar_lea.vmem %s0, %s385
      %s387 = smul.u32 2, %s22
      %s388 = smul.u32 2, %s22
      %p389 = scmp.lt.s32.totalorder %s388, 3
      %s390 = scalar_select %p389, %s388, 3
      %s391 = smul.addr %s390, 2
      %s392 = smul.addr %s391, 8
      %s393 = scalar_lea.vmem %s11, %s392
      %s394 = smul.u32 2, %s22
      %v396 = vld [vmem:[%s386] sm:$0xff]
      %v397 = vld [vmem:[%s386 + $0x8] sm:$0xff]
      %v398 = vld [vmem:[%s386 + $0x10] sm:$0xff]
      %v399 = vld [vmem:[%s386 + $0x18] sm:$0xff]
      %vm404 = vcmask 1040384
      %v405 = vrot.slane %v396, 7
      %v406 = vrot.slane %v397, 7
      %v407 = vsel %vm404, %v405, %v406
      %v408 = vrot.slane %v398, 7
      %v409 = vrot.slane %v399, 7
      %v410 = vsel %vm404, %v408, %v409
      %v417 = vsel %vm404, 0.0, %v405
      %v418 = vsel %vm404, 0.0, %v408
      %v419 = vsel %vm404, %v406, 0.0
      %v420 = vsel %vm404, %v409, 0.0
      %421 = vrot.lane.b32.xlu0 %v396, 4
      %v422 = vpop.permute.xlu0 %421
      %423 = vrot.lane.b32.xlu0 %v397, 4
      %v424 = vpop.permute.xlu0 %423
      %425 = vrot.lane.b32.xlu0 %v398, 4
      %v426 = vpop.permute.xlu0 %425
      %427 = vrot.lane.b32.xlu0 %v399, 4
      %v428 = vpop.permute.xlu0 %427
      %vm437 = vcmask 1045504
      %v438 = vrot.slane %v417, 2
      %v439 = vrot.slane %v407, 2
      %v440 = vsel %vm437, %v438, %v439
      %v441 = vrot.slane %v419, 2
      %v442 = vsel %vm437, %v439, %v441
      %v443 = vrot.slane %v418, 2
      %v444 = vrot.slane %v410, 2
      %v445 = vsel %vm437, %v443, %v444
      %v446 = vrot.slane %v420, 2
      %v447 = vsel %vm437, %v444, %v446
      %448 = vrot.lane.b32.xlu0 %v440, 8
      %v449 = vpop.permute.xlu0 %448
      %450 = vrot.lane.b32.xlu0 %v442, 8
      %v451 = vpop.permute.xlu0 %450
      %452 = vrot.lane.b32.xlu0 %v445, 8
      %v453 = vpop.permute.xlu0 %452
      %454 = vrot.lane.b32.xlu0 %v447, 8
      %v455 = vpop.permute.xlu0 %454
      %vm460 = vcmask 31744
      %v461 = vsel %vm460, %v417, %v422
      %v462 = vsel %vm460, %v407, %v424
      %v463 = vsel %vm460, %v418, %v426
      %v464 = vsel %vm460, %v410, %v428
      %vm465 = vcmask 64512
      %v466 = vsel %vm465, %v461, %v449
      %v467 = vsel %vm465, %v462, %v451
      %v468 = vsel %vm465, %v463, %v453
      %v469 = vsel %vm465, %v464, %v455
      %v470 = vpack.c.bf16 %v467, %v466
      %v471 = vpack.c.bf16 %v469, %v468
      %v472 = vld [vmem:[%s1] sm:$0xf]
      %v473 = vld [vmem:[%s1 + $0x4] sm:$0x3]
      %v474 = vld [vmem:[%s2] sm:$0x1]
      %v476 = vlaneseq
      %v477 = vshrl.u32 %v476, 7
      %v478 = vsub.s32 0, %v477
      %v479 = vrot.slane %v474, %v478
      %v483 = vunpack.c.l.b16 %v472
      %v484 = vunpack.c.l.b16 %v473
      %v485 = vpack.c.b16 %v484, %v483
      %vm486 = vcmask 97280
      %v488 = vsel %vm486, %v470, 0
      %v491 = vsel %vm486, %v471, 0
      %v494 = vsel %vm437, %v485, 0
      %496 = vmatprep.subr.bf16.mxu0 0
      %497 = vmatpush1.bf16.msra.mxu0 %v494
      %498 = vmatprep.subr.bf16.mxu0 0
      %499 = vmatpush1.bf16.msra.mxu0 0
      %500 = vmatprep.subr.bf16.mxu0 0
      %501 = vmatpush1.bf16.msra.mxu0 0
      %502 = vmatprep.subr.bf16.mxu0 0
      %503 = vmatpush1.bf16.msra.mxu0 0
      %504 = vmatprep.subr.bf16.mxu0 0
      %505 = vmatpush1.bf16.msra.mxu0 0
      %506 = vmatprep.subr.bf16.mxu0 0
      %507 = vmatpush1.bf16.msra.mxu0 0
      %508 = vmatprep.subr.bf16.mxu0 0
      %509 = vmatpush1.bf16.msra.mxu0 0
      %510 = vmatprep.subr.bf16.mxu0 0
      %511 = vmatpush1.bf16.msra.mxu0 0
      %512 = vmatprep.subr.bf16.mxu0 0
      %513 = vmatpush1.bf16.msra.mxu0 0
      %514 = vmatprep.subr.bf16.mxu0 0
      %515 = vmatpush1.bf16.msra.mxu0 0
      %516 = vmatprep.subr.bf16.mxu0 0
      %517 = vmatpush1.bf16.msra.mxu0 0
      %518 = vmatprep.subr.bf16.mxu0 0
      %519 = vmatpush1.bf16.msra.mxu0 0
      %520 = vmatprep.subr.bf16.mxu0 0
      %521 = vmatpush1.bf16.msra.mxu0 0
      %522 = vmatprep.subr.bf16.mxu0 0
      %523 = vmatpush1.bf16.msra.mxu0 0
      %524 = vmatprep.subr.bf16.mxu0 0
      %525 = vmatpush1.bf16.msra.mxu0 0
      %526 = vmatprep.subr.bf16.mxu0 0
      %527 = vmatpush1.bf16.msra.mxu0 0
      %528 = vmatprep.mubr.bf16.mxu0 0
      %529 = vmatmul.mubr.bf16.gmra.mrb[0].mxu0 %v488
      %v530 = vpop.f32.mrb[0].mxu0
      %v531 = vadd.f32 %v479, %v530
      %v532 = vpop.f32.mrb[0].mxu0
      %v533 = vpop.f32.mrb[0].mxu0
      %v534 = vadd.f32 %v479, %v533
      %v535 = vpop.f32.mrb[0].mxu0
      %536 = vmatprep.mubr.bf16.mxu0 0
      %537 = vmatmul.mubr.bf16.gmra.mrb[0].mxu0 %v491
      %v538 = vpop.f32.mrb[0].mxu0
      %v539 = vadd.f32 %v479, %v538
      %v540 = vpop.f32.mrb[0].mxu0
      %v541 = vpop.f32.mrb[0].mxu0
      %v542 = vadd.f32 %v479, %v541
      %v543 = vpop.f32.mrb[0].mxu0
      %544 = vdwg.mxu0
      %v545 = vld [vmem:[%s3] sm:$0x1]
      %v546 = vld [vmem:[%s4] sm:$0x1]
      %v547 = vsel %vm465, %v531, 0.0
      %548 = vadd.xlane.f32.xlu0 %v547
      %v549 = vpop.xlane.xlu0 %548
      %v550 = vsel %vm465, %v534, 0.0
      %551 = vadd.xlane.f32.xlu0 %v550
      %v552 = vpop.xlane.xlu0 %551
      %v553 = vsel %vm465, %v539, 0.0
      %554 = vadd.xlane.f32.xlu0 %v553
      %v555 = vpop.xlane.xlu0 %554
      %v556 = vsel %vm465, %v542, 0.0
      %557 = vadd.xlane.f32.xlu0 %v556
      %v558 = vpop.xlane.xlu0 %557
      %v559 = vadd.f32 %v549, %v552
      %v560 = vrot.slane %v559, 4
      %v561 = vadd.f32 %v559, %v560
      %v562 = vrot.slane %v561, 2
      %v563 = vadd.f32 %v561, %v562
      %v564 = vrot.slane %v563, 1
      %v565 = vadd.f32 %v563, %v564
      %v566 = vadd.f32 %v555, %v558
      %v567 = vrot.slane %v566, 4
      %v568 = vadd.f32 %v566, %v567
      %v569 = vrot.slane %v568, 2
      %v570 = vadd.f32 %v568, %v569
      %v571 = vrot.slane %v570, 1
      %v572 = vadd.f32 %v570, %v571
      %v573 = vmul.f32 %v531, %v531
      %v574 = vmul.f32 %v534, %v534
      %v575 = vmul.f32 %v539, %v539
      %v576 = vmul.f32 %v542, %v542
      %v577 = vsel %vm465, %v573, 0.0
      %578 = vadd.xlane.f32.xlu0 %v577
      %v579 = vpop.xlane.xlu0 %578
      %v580 = vsel %vm465, %v574, 0.0
      %581 = vadd.xlane.f32.xlu0 %v580
      %v582 = vpop.xlane.xlu0 %581
      %v583 = vsel %vm465, %v575, 0.0
      %584 = vadd.xlane.f32.xlu0 %v583
      %v585 = vpop.xlane.xlu0 %584
      %v586 = vsel %vm465, %v576, 0.0
      %587 = vadd.xlane.f32.xlu0 %v586
      %v588 = vpop.xlane.xlu0 %587
      %v589 = vadd.f32 %v579, %v582
      %v590 = vrot.slane %v589, 4
      %v591 = vadd.f32 %v589, %v590
      %v592 = vrot.slane %v591, 2
      %v593 = vadd.f32 %v591, %v592
      %v594 = vrot.slane %v593, 1
      %v595 = vadd.f32 %v593, %v594
      %v596 = vadd.f32 %v585, %v588
      %v597 = vrot.slane %v596, 4
      %v598 = vadd.f32 %v596, %v597
      %v599 = vrot.slane %v598, 2
      %v600 = vadd.f32 %v598, %v599
      %v601 = vrot.slane %v600, 1
      %v602 = vadd.f32 %v600, %v601
      %v603 = vrcp.pop 128.0
      %v604 = vmul.f32 %v565, %v603
      %v605 = vmul.f32 %v572, %v603
      %v606 = vmul.f32 %v595, %v603
      %v607 = vmul.f32 %v602, %v603
      %v608 = vmul.f32 %v604, %v604
      %v609 = vmul.f32 %v605, %v605
      %v610 = vsub.f32 %v606, %v608
      %v611 = vsub.f32 %v607, %v609
      %v612 = vmax.f32 %v610, 0.0
      %v613 = vmax.f32 %v611, 0.0
      %v614 = vadd.f32 %v612, 1e-05
      %v615 = vadd.f32 %v613, 1e-05
      %v616 = vrsqrt.pop %v614
      %v617 = vrsqrt.pop %v615
      %v618 = vsub.f32 %v531, %v604
      %v619 = vsub.f32 %v534, %v604
      %v620 = vsub.f32 %v539, %v605
      %v621 = vsub.f32 %v542, %v605
      %v622 = vmul.f32 %v618, %v616
      %v623 = vmul.f32 %v619, %v616
      %v624 = vmul.f32 %v620, %v617
      %v625 = vmul.f32 %v621, %v617
      %v627 = vlaneseq
      %v628 = vshrl.u32 %v627, 7
      %v629 = vsub.s32 0, %v628
      %v630 = vrot.slane %v545, %v629
      %v632 = vmul.f32 %v622, %v630
      %v633 = vmul.f32 %v623, %v630
      %v634 = vmul.f32 %v624, %v630
      %v635 = vmul.f32 %v625, %v630
      %v637 = vlaneseq
      %v638 = vshrl.u32 %v637, 7
      %v639 = vsub.s32 0, %v638
      %v640 = vrot.slane %v546, %v639
      %v642 = vadd.f32 %v632, %v640
      %v643 = vadd.f32 %v633, %v640
      %v644 = vadd.f32 %v634, %v640
      %v645 = vadd.f32 %v635, %v640
      %vm646 = vcmp.gt.f32.partialorder %v642, 0.0
      %vm647 = vcmp.gt.f32.partialorder %v643, 0.0
      %vm648 = vcmp.gt.f32.partialorder %v644, 0.0
      %vm649 = vcmp.gt.f32.partialorder %v645, 0.0
      %v650 = vmul.f32 %v642, 0.2
      %v651 = vmul.f32 %v643, 0.2
      %v652 = vmul.f32 %v644, 0.2
      %v653 = vmul.f32 %v645, 0.2
      %v654 = vsel %vm646, %v642, %v650
      %v655 = vsel %vm647, %v643, %v651
      %v656 = vsel %vm648, %v644, %v652
      %v657 = vsel %vm649, %v645, %v653
      %v662 = vrot.slane %v654, 7
      %v663 = vrot.slane %v655, 7
      %v664 = vsel %vm404, %v662, %v663
      %v665 = vrot.slane %v656, 7
      %v666 = vrot.slane %v657, 7
      %v667 = vsel %vm404, %v665, %v666
      %v674 = vsel %vm404, 0.0, %v662
      %v675 = vsel %vm404, 0.0, %v665
      %v676 = vsel %vm404, %v663, 0.0
      %v677 = vsel %vm404, %v666, 0.0
      %678 = vrot.lane.b32.xlu0 %v654, 8
      %v679 = vpop.permute.xlu0 %678
      %680 = vrot.lane.b32.xlu0 %v655, 8
      %v681 = vpop.permute.xlu0 %680
      %682 = vrot.lane.b32.xlu0 %v656, 8
      %v683 = vpop.permute.xlu0 %682
      %684 = vrot.lane.b32.xlu0 %v657, 8
      %v685 = vpop.permute.xlu0 %684
      %v694 = vrot.slane %v674, 2
      %v695 = vrot.slane %v664, 2
      %v696 = vsel %vm437, %v694, %v695
      %v697 = vrot.slane %v676, 2
      %v698 = vsel %vm437, %v695, %v697
      %v699 = vrot.slane %v675, 2
      %v700 = vrot.slane %v667, 2
      %v701 = vsel %vm437, %v699, %v700
      %v702 = vrot.slane %v677, 2
      %v703 = vsel %vm437, %v700, %v702
      %704 = vrot.lane.b32.xlu0 %v696, 16
      %v705 = vpop.permute.xlu0 %704
      %706 = vrot.lane.b32.xlu0 %v698, 16
      %v707 = vpop.permute.xlu0 %706
      %708 = vrot.lane.b32.xlu0 %v701, 16
      %v709 = vpop.permute.xlu0 %708
      %710 = vrot.lane.b32.xlu0 %v703, 16
      %v711 = vpop.permute.xlu0 %710
      %v716 = vsel %vm465, %v674, %v679
      %v717 = vsel %vm465, %v664, %v681
      %v718 = vsel %vm465, %v675, %v683
      %v719 = vsel %vm465, %v667, %v685
      %vm720 = vcmask 130048
      %v721 = vsel %vm720, %v716, %v705
      %v722 = vsel %vm720, %v717, %v707
      %v723 = vsel %vm720, %v718, %v709
      %v724 = vsel %vm720, %v719, %v711
      %v725 = vpack.c.bf16 %v722, %v721
      %v726 = vpack.c.bf16 %v724, %v723
      %v727 = vld [vmem:[%s5] sm:$0xf]
      %v728 = vld [vmem:[%s5 + $0x4] sm:$0xf]
      %v729 = vld [vmem:[%s5 + $0x8] sm:$0xf]
      %v730 = vld [vmem:[%s6] sm:$0x1]
      %v732 = vlaneseq
      %v733 = vshrl.u32 %v732, 7
      %v734 = vsub.s32 0, %v733
      %v735 = vrot.slane %v730, %v734
      %v740 = vunpack.c.l.b16 %v727
      %v741 = vunpack.c.l.b16 %v728
      %v742 = vunpack.c.l.b16 %v729
      %v743 = vpack.c.b16 %v741, %v740
      %v744 = vpack.c.b16 %v742, %v742
      %vm746 = vcmask 195584
      %v748 = vsel %vm746, %v725, 0
      %v751 = vsel %vm746, %v726, 0
      %vm753 = vcmask 1043456
      %v755 = vsel %vm753, %v744, 0
      %757 = vmatprep.subr.bf16.mxu0 0
      %758 = vmatpush1.bf16.msra.mxu0 %v743
      %759 = vmatprep.subr.bf16.mxu0 0
      %760 = vmatpush1.bf16.msra.mxu0 %v755
      %761 = vmatprep.subr.bf16.mxu0 0
      %762 = vmatpush1.bf16.msra.mxu0 0
      %763 = vmatprep.subr.bf16.mxu0 0
      %764 = vmatpush1.bf16.msra.mxu0 0
      %765 = vmatprep.subr.bf16.mxu0 0
      %766 = vmatpush1.bf16.msra.mxu0 0
      %767 = vmatprep.subr.bf16.mxu0 0
      %768 = vmatpush1.bf16.msra.mxu0 0
      %769 = vmatprep.subr.bf16.mxu0 0
      %770 = vmatpush1.bf16.msra.mxu0 0
      %771 = vmatprep.subr.bf16.mxu0 0
      %772 = vmatpush1.bf16.msra.mxu0 0
      %773 = vmatprep.subr.bf16.mxu0 0
      %774 = vmatpush1.bf16.msra.mxu0 0
      %775 = vmatprep.subr.bf16.mxu0 0
      %776 = vmatpush1.bf16.msra.mxu0 0
      %777 = vmatprep.subr.bf16.mxu0 0
      %778 = vmatpush1.bf16.msra.mxu0 0
      %779 = vmatprep.subr.bf16.mxu0 0
      %780 = vmatpush1.bf16.msra.mxu0 0
      %781 = vmatprep.subr.bf16.mxu0 0
      %782 = vmatpush1.bf16.msra.mxu0 0
      %783 = vmatprep.subr.bf16.mxu0 0
      %784 = vmatpush1.bf16.msra.mxu0 0
      %785 = vmatprep.subr.bf16.mxu0 0
      %786 = vmatpush1.bf16.msra.mxu0 0
      %787 = vmatprep.subr.bf16.mxu0 0
      %788 = vmatpush1.bf16.msra.mxu0 0
      %789 = vmatprep.mubr.bf16.mxu0 0
      %790 = vmatmul.mubr.bf16.gmra.mrb[0].mxu0 %v748
      %v791 = vpop.f32.mrb[0].mxu0
      %v792 = vadd.f32 %v735, %v791
      %v793 = vpop.f32.mrb[0].mxu0
      %v794 = vpop.f32.mrb[0].mxu0
      %v795 = vadd.f32 %v735, %v794
      %v796 = vpop.f32.mrb[0].mxu0
      %797 = vmatprep.mubr.bf16.mxu0 0
      %798 = vmatmul.mubr.bf16.gmra.mrb[0].mxu0 %v751
      %v799 = vpop.f32.mrb[0].mxu0
      %v800 = vadd.f32 %v735, %v799
      %v801 = vpop.f32.mrb[0].mxu0
      %v802 = vpop.f32.mrb[0].mxu0
      %v803 = vadd.f32 %v735, %v802
      %v804 = vpop.f32.mrb[0].mxu0
      %805 = vdwg.mxu0
      %v806 = vld [vmem:[%s7] sm:$0x1]
      %v807 = vld [vmem:[%s8] sm:$0x1]
      %v808 = vsel %vm465, %v792, 0.0
      %809 = vadd.xlane.f32.xlu0 %v808
      %v810 = vpop.xlane.xlu0 %809
      %v811 = vsel %vm465, %v795, 0.0
      %812 = vadd.xlane.f32.xlu0 %v811
      %v813 = vpop.xlane.xlu0 %812
      %v814 = vsel %vm465, %v800, 0.0
      %815 = vadd.xlane.f32.xlu0 %v814
      %v816 = vpop.xlane.xlu0 %815
      %v817 = vsel %vm465, %v803, 0.0
      %818 = vadd.xlane.f32.xlu0 %v817
      %v819 = vpop.xlane.xlu0 %818
      %v820 = vadd.f32 %v810, %v813
      %v821 = vrot.slane %v820, 4
      %v822 = vadd.f32 %v820, %v821
      %v823 = vrot.slane %v822, 2
      %v824 = vadd.f32 %v822, %v823
      %v825 = vrot.slane %v824, 1
      %v826 = vadd.f32 %v824, %v825
      %v827 = vadd.f32 %v816, %v819
      %v828 = vrot.slane %v827, 4
      %v829 = vadd.f32 %v827, %v828
      %v830 = vrot.slane %v829, 2
      %v831 = vadd.f32 %v829, %v830
      %v832 = vrot.slane %v831, 1
      %v833 = vadd.f32 %v831, %v832
      %v834 = vmul.f32 %v792, %v792
      %v835 = vmul.f32 %v795, %v795
      %v836 = vmul.f32 %v800, %v800
      %v837 = vmul.f32 %v803, %v803
      %v838 = vsel %vm465, %v834, 0.0
      %839 = vadd.xlane.f32.xlu0 %v838
      %v840 = vpop.xlane.xlu0 %839
      %v841 = vsel %vm465, %v835, 0.0
      %842 = vadd.xlane.f32.xlu0 %v841
      %v843 = vpop.xlane.xlu0 %842
      %v844 = vsel %vm465, %v836, 0.0
      %845 = vadd.xlane.f32.xlu0 %v844
      %v846 = vpop.xlane.xlu0 %845
      %v847 = vsel %vm465, %v837, 0.0
      %848 = vadd.xlane.f32.xlu0 %v847
      %v849 = vpop.xlane.xlu0 %848
      %v850 = vadd.f32 %v840, %v843
      %v851 = vrot.slane %v850, 4
      %v852 = vadd.f32 %v850, %v851
      %v853 = vrot.slane %v852, 2
      %v854 = vadd.f32 %v852, %v853
      %v855 = vrot.slane %v854, 1
      %v856 = vadd.f32 %v854, %v855
      %v857 = vadd.f32 %v846, %v849
      %v858 = vrot.slane %v857, 4
      %v859 = vadd.f32 %v857, %v858
      %v860 = vrot.slane %v859, 2
      %v861 = vadd.f32 %v859, %v860
      %v862 = vrot.slane %v861, 1
      %v863 = vadd.f32 %v861, %v862
      %v864 = vmul.f32 %v826, %v603
      %v865 = vmul.f32 %v833, %v603
      %v866 = vmul.f32 %v856, %v603
      %v867 = vmul.f32 %v863, %v603
      %v868 = vmul.f32 %v864, %v864
      %v869 = vmul.f32 %v865, %v865
      %v870 = vsub.f32 %v866, %v868
      %v871 = vsub.f32 %v867, %v869
      %v872 = vmax.f32 %v870, 0.0
      %v873 = vmax.f32 %v871, 0.0
      %v874 = vadd.f32 %v872, 1e-05
      %v875 = vadd.f32 %v873, 1e-05
      %v876 = vrsqrt.pop %v874
      %v877 = vrsqrt.pop %v875
      %v878 = vsub.f32 %v792, %v864
      %v879 = vsub.f32 %v795, %v864
      %v880 = vsub.f32 %v800, %v865
      %v881 = vsub.f32 %v803, %v865
      %v882 = vmul.f32 %v878, %v876
      %v883 = vmul.f32 %v879, %v876
      %v884 = vmul.f32 %v880, %v877
      %v885 = vmul.f32 %v881, %v877
      %v887 = vlaneseq
      %v888 = vshrl.u32 %v887, 7
      %v889 = vsub.s32 0, %v888
      %v890 = vrot.slane %v806, %v889
      %v892 = vmul.f32 %v882, %v890
      %v893 = vmul.f32 %v883, %v890
      %v894 = vmul.f32 %v884, %v890
      %v895 = vmul.f32 %v885, %v890
      %v897 = vlaneseq
      %v898 = vshrl.u32 %v897, 7
      %v899 = vsub.s32 0, %v898
      %v900 = vrot.slane %v807, %v899
      %v902 = vadd.f32 %v892, %v900
      %v903 = vadd.f32 %v893, %v900
      %v904 = vadd.f32 %v894, %v900
      %v905 = vadd.f32 %v895, %v900
      %v906 = vpack.c.bf16 %v397, %v396
      %v907 = vpack.c.bf16 %v399, %v398
      %v908 = vld [vmem:[%s9] sm:$0x3]
      %v909 = vld [vmem:[%s10] sm:$0x1]
      %v911 = vlaneseq
      %v912 = vshrl.u32 %v911, 7
      %v913 = vsub.s32 0, %v912
      %v914 = vrot.slane %v909, %v913
      %v917 = vsel %vm460, %v906, 0
      %v920 = vsel %vm460, %v907, 0
      %vm922 = vcmask 1041408
      %v924 = vsel %vm922, %v908, 0
      %926 = vmatprep.subr.bf16.mxu0 0
      %927 = vmatpush1.bf16.msra.mxu0 %v924
      %928 = vmatprep.subr.bf16.mxu0 0
      %929 = vmatpush1.bf16.msra.mxu0 0
      %930 = vmatprep.subr.bf16.mxu0 0
      %931 = vmatpush1.bf16.msra.mxu0 0
      %932 = vmatprep.subr.bf16.mxu0 0
      %933 = vmatpush1.bf16.msra.mxu0 0
      %934 = vmatprep.subr.bf16.mxu0 0
      %935 = vmatpush1.bf16.msra.mxu0 0
      %936 = vmatprep.subr.bf16.mxu0 0
      %937 = vmatpush1.bf16.msra.mxu0 0
      %938 = vmatprep.subr.bf16.mxu0 0
      %939 = vmatpush1.bf16.msra.mxu0 0
      %940 = vmatprep.subr.bf16.mxu0 0
      %941 = vmatpush1.bf16.msra.mxu0 0
      %942 = vmatprep.subr.bf16.mxu0 0
      %943 = vmatpush1.bf16.msra.mxu0 0
      %944 = vmatprep.subr.bf16.mxu0 0
      %945 = vmatpush1.bf16.msra.mxu0 0
      %946 = vmatprep.subr.bf16.mxu0 0
      %947 = vmatpush1.bf16.msra.mxu0 0
      %948 = vmatprep.subr.bf16.mxu0 0
      %949 = vmatpush1.bf16.msra.mxu0 0
      %950 = vmatprep.subr.bf16.mxu0 0
      %951 = vmatpush1.bf16.msra.mxu0 0
      %952 = vmatprep.subr.bf16.mxu0 0
      %953 = vmatpush1.bf16.msra.mxu0 0
      %954 = vmatprep.subr.bf16.mxu0 0
      %955 = vmatpush1.bf16.msra.mxu0 0
      %956 = vmatprep.subr.bf16.mxu0 0
      %957 = vmatpush1.bf16.msra.mxu0 0
      %958 = vmatprep.mubr.bf16.mxu0 0
      %959 = vmatmul.mubr.bf16.gmra.mrb[0].mxu0 %v917
      %v960 = vpop.f32.mrb[0].mxu0
      %v961 = vadd.f32 %v914, %v960
      %v962 = vpop.f32.mrb[0].mxu0
      %v963 = vpop.f32.mrb[0].mxu0
      %v964 = vadd.f32 %v914, %v963
      %v965 = vpop.f32.mrb[0].mxu0
      %966 = vmatprep.mubr.bf16.mxu0 0
      %967 = vmatmul.mubr.bf16.gmra.mrb[0].mxu0 %v920
      %v968 = vpop.f32.mrb[0].mxu0
      %v969 = vadd.f32 %v914, %v968
      %v970 = vpop.f32.mrb[0].mxu0
      %v971 = vpop.f32.mrb[0].mxu0
      %v972 = vadd.f32 %v914, %v971
      %v973 = vpop.f32.mrb[0].mxu0
      %974 = vdwg.mxu0
      %v975 = vadd.f32 %v902, %v961
      %v976 = vadd.f32 %v903, %v964
      %v977 = vadd.f32 %v904, %v969
      %v978 = vadd.f32 %v905, %v972
      %vm979 = vcmp.gt.f32.partialorder %v975, 0.0
      %vm980 = vcmp.gt.f32.partialorder %v976, 0.0
      %vm981 = vcmp.gt.f32.partialorder %v977, 0.0
      %vm982 = vcmp.gt.f32.partialorder %v978, 0.0
      %v983 = vmul.f32 %v975, 0.2
      %v984 = vmul.f32 %v976, 0.2
      %v985 = vmul.f32 %v977, 0.2
      %v986 = vmul.f32 %v978, 0.2
      %v987 = vsel %vm979, %v975, %v983
      %v988 = vsel %vm980, %v976, %v984
      %v989 = vsel %vm981, %v977, %v985
      %v990 = vsel %vm982, %v978, %v986
      %991 = vst.msk [vmem:[%s393] sm:$0xff] %vm465, %v987
      %992 = vst.msk [vmem:[%s393 + $0x8] sm:$0xff] %vm465, %v988
      %993 = vst.msk [vmem:[%s393 + $0x10] sm:$0xff] %vm465, %v989
      %994 = vst.msk [vmem:[%s393 + $0x18] sm:$0xff] %vm465, %v990
      %s995 = smul.u32 2, %s22
      %p996 = scmp.lt.s32.totalorder %s995, 3
      %s997 = scalar_select %p996, %s995, 3
      %s998 = smul.addr %s997, 2
      %s999 = smul.addr %s998, 8
      %s1000 = scalar_lea.vmem %s11, %s999
      // Predicated region
      $region65: #{tpu_custom_call.1} parent=63 // pred_check
        %p1001 = pneg %p276
      $region66: #{tpu_custom_call.1} parent=63 // pred_check_branch
        %1003 = sbr.rel (%p1001) target = $region68
      $region67: #{tpu_custom_call.1} parent=63 // pred_region
        %s1004 = smul.u32 2, %s22
      $region68: #{tpu_custom_call.1} parent=63 // pred_fallthru
        _
    $region64: #{tpu_custom_call.1} parent=5 // pred_fallthru
      _
    %p1005 = scmp.le.s32.totalorder 2, %s17
    // Predicated region
    $region69: #{tpu_custom_call.1} parent=5 // pred_check
      %p1006 = pneg %p1005
    $region70: #{tpu_custom_call.1} parent=5 // pred_check_branch
      %1008 = sbr.rel (%p1006) target = $region72
    $region71: #{tpu_custom_call.1} parent=5 // pred_region
      %s1009 = ssub.s32 %s17, 2
      // Predicated region
      $region73: #{tpu_custom_call.1} parent=71 // pred_check
        %p1010 = pneg %p282
      $region74: #{tpu_custom_call.1} parent=71 // pred_check_branch
        %1012 = sbr.rel (%p1010) target = $region76
      $region75: #{tpu_custom_call.1} parent=71 // pred_region
        %s1013 = smul.u32 2, %s23
        %p1014 = scmp.lt.s32.totalorder %s1013, 3
        %s1015 = scalar_select %p1014, %s1013, 3
        %s1016 = smul.addr %s1015, 2
        %s1017 = smul.addr %s1016, 8
        %s1018 = scalar_lea.vmem %s11, %s1017
      $region76: #{tpu_custom_call.1} parent=71 // pred_fallthru
        _
    $region72: #{tpu_custom_call.1} parent=5 // pred_fallthru
      _
  $region6: #{tpu_custom_call.1} parent=0 // loop_footer
    %s21 = sadd.s32 1, %s17
  $region7: #{tpu_custom_call.1} parent=0 // loop_footer_branch
    %16 = sbr.rel target = $region3
  $region8: #{tpu_custom_call.1} parent=0 // loop_exit
    _

</llo_original>
